<compile_context>
chip_gen: v7x
topology: tpu7x:2x2x1
jax: 0.10.0
libtpu: 0.0.40
codegen_flags: <defaults>
</compile_context>

<pallas_src>
import math

import jax
import jax.numpy as jnp
import numpy as np
from jax.experimental import pallas as pl
from jax.experimental.pallas import tpu as pltpu

KH, KW = 2, 2          # conv kernel size
C_OUT = 2              # output channels per conv
C_IN = 1               # input channels
N_PLANES = 2 * C_OUT   # conv1 oc0, conv1 oc1, conv2 oc0, conv2 oc1

# Conservative per-grid-step VMEM budget.  Live f32 planes of size (H, NB*W)
# per step: 2x input (double buffer) + 2x N_PLANES output (double buffer)
# + ~6 temporaries (relu'd x, shifted taps, accumulator) ~= 16 planes.
# 12 MiB keeps us inside v5e's 16 MiB default scoped VMEM and well inside
# v7x's 64 MiB physical VMEM.
_VMEM_STEP_BUDGET = 12 * 1024 * 1024
_LIVE_PLANES = 16


def _shift_rows_up(a, k):
    """p[i, :] = a[i + k, :]; bottom k rows zero-filled (sublane-axis shift)."""
    if k == 0:
        return a
    pad = jnp.zeros((k, a.shape[1]), a.dtype)
    return jnp.concatenate([a[k:, :], pad], axis=0)


def _shift_cols_left(a, k):
    """p[:, j] = a[:, j + k]; last k lanes zero-filled (lane-axis shift)."""
    if k == 0:
        return a
    pad = jnp.zeros((a.shape[0], k), a.dtype)
    return jnp.concatenate([a[:, k:], pad], axis=1)


def _double_conv_kernel(w_ref, b_ref, x_ref, o_ref):
    """ReLU + two 2x2 valid convolutions over a lane-packed batch tile.

    x_ref: (H, NB*W) f32 VMEM -- NB images side by side along the lane axis.
    w_ref: (N_PLANES*KH*KW,) f32 SMEM  (conv1 oc0, conv1 oc1, conv2 oc0, conv2 oc1).
    b_ref: (N_PLANES,) f32 SMEM.
    o_ref: (N_PLANES, H, NB*W) f32 VMEM -- full-plane, lane-dense stores.
           Only rows < H-KH+1 and, per image, columns < W-KW+1 are valid;
           the wrapper slices the rest away (the shifts below contaminate
           exactly that discarded border).
    """
    x = jnp.maximum(x_ref[...], jnp.float32(0.0))         # ReLU once, shared

    # Lane-axis (column) shifts first — they are the pricier cross-lane ops —
    # then sublane (row) shifts of those.  KH*KW tap planes total, shared by
    # all N_PLANES output channels.
    col_shifted = [_shift_cols_left(x, kw) for kw in range(KW)]
    taps = [_shift_rows_up(col_shifted[kw], kh)
            for kh in range(KH) for kw in range(KW)]

    n_taps = KH * KW
    wv = [w_ref[i] for i in range(N_PLANES * n_taps)]     # SMEM scalars -> locals
    bv = [b_ref[i] for i in range(N_PLANES)]

    for ch in range(N_PLANES):
        acc = taps[0] * wv[ch * n_taps] + bv[ch]
        for t in range(1, n_taps):
            acc = acc + taps[t] * wv[ch * n_taps + t]
        o_ref[ch] = acc.astype(o_ref.dtype)               # unmasked full-lane store


def _pick_tiling(n, h, w):
    """Returns (images_per_lane_group, groups_per_step, padded_batch)."""
    g = 128 // math.gcd(w, 128)               # smallest NB with NB*W % 128 == 0
    n_groups = pl.cdiv(n, g)
    plane_group_bytes = h * g * w * 4         # one (H, g*W) f32 plane
    budget_groups = max(1, _VMEM_STEP_BUDGET // (_LIVE_PLANES * plane_group_bytes))
    groups_per_step = min(n_groups, budget_groups)
    # Prefer >= 2 grid steps so the "parallel" batch axis can be split across
    # v7x's two TensorCores (harmless on v5e/v6e: ~0.35 us extra per step).
    if groups_per_step >= n_groups and n_groups >= 2:
        groups_per_step = pl.cdiv(n_groups, 2)
    n_steps = pl.cdiv(n_groups, groups_per_step)
    n_pad = n_steps * groups_per_step * g
    # NOTE: for very large H*W a single lane group can still exceed the
    # budget; spatial (H) tiling would then be needed. Fine for this module.
    return g, groups_per_step, n_pad


def double_weights_per_activation(x, w1, b1, w2, b2):
    """x: (N, 1, H, W). w*: (C_OUT, 1, KH, KW). b*: (C_OUT,). Returns (out1, out2) NCHW."""
    n, c, h, w = x.shape
    assert c == C_IN
    ho, wo = h - KH + 1, w - KW + 1

    # Flat 1-D SMEM parameter arrays:
    #   weights: [conv1 oc0 taps, conv1 oc1 taps, conv2 oc0 taps, conv2 oc1 taps]
    w_all = jnp.concatenate(
        [w1.reshape(C_OUT, KH * KW), w2.reshape(C_OUT, KH * KW)], axis=0
    ).reshape(-1).astype(jnp.float32)                       # (N_PLANES*KH*KW,)
    b_all = jnp.concatenate(
        [b1.reshape(-1), b2.reshape(-1)]).astype(jnp.float32)   # (N_PLANES,)

    g, groups_per_step, n_pad = _pick_tiling(n, h, w)
    nb = groups_per_step * g                                # images per grid step
    grid = (n_pad // nb,)

    # Lane-dense input slab (H, N_pad*W); image i occupies lanes [i*W, (i+1)*W).
    # Wrapper-side transpose of the *input* is cheap layout plumbing (the 4x
    # larger output stays lane-dense inside the kernel).
    xf = x.astype(jnp.float32).reshape(n, h, w)
    if n_pad != n:
        xf = jnp.pad(xf, ((0, n_pad - n), (0, 0), (0, 0)))
    x2d = jnp.transpose(xf, (1, 0, 2)).reshape(h, n_pad * w)

    smem = pl.BlockSpec(memory_space=pltpu.MemorySpace.SMEM)
    x_spec = pl.BlockSpec((h, nb * w), lambda i: (0, i))
    o_spec = pl.BlockSpec((N_PLANES, h, nb * w), lambda i: (0, 0, i))

    out = pl.pallas_call(
        _double_conv_kernel,
        grid=grid,
        in_specs=[smem, smem, x_spec],
        out_specs=o_spec,
        out_shape=jax.ShapeDtypeStruct((N_PLANES, h, n_pad * w), jnp.float32),
        compiler_params=pltpu.CompilerParams(
            dimension_semantics=("parallel",),
            vmem_limit_bytes=32 * 1024 * 1024,
        ),
    )(w_all, b_all, x2d)

    # Unpack: drop the invalid border (last KH-1 rows / KW-1 cols per image —
    # exactly where the in-kernel shifts deposited junk) and the batch
    # padding, then back to NCHW.
    out = out.reshape(N_PLANES, h, n_pad, w)[:, :ho, :n, :wo]
    out = jnp.transpose(out, (2, 0, 1, 3))                  # (N, N_PLANES, Ho, Wo)
    return out[:, :C_OUT], out[:, C_OUT:]


def _reference(x, w, b):
    # Plain numpy reference: relu -> 2x2 valid conv.
    xr = np.maximum(np.asarray(x), 0.0)
    n, _, h, w_ = xr.shape
    ho, wo = h - KH + 1, w_ - KW + 1
    out = np.zeros((n, C_OUT, ho, wo), np.float32)
    wnp = np.asarray(w)
    bnp = np.asarray(b)
    for oc in range(C_OUT):
        acc = np.zeros((n, ho, wo), np.float32)
        for kh in range(KH):
            for kw in range(KW):
                acc += wnp[oc, 0, kh, kw] * xr[:, 0, kh:kh + ho, kw:kw + wo]
        out[:, oc] = acc + bnp[oc]
    return out


if __name__ == "__main__":
    key = jax.random.PRNGKey(0)
    kx, kw1, kb1, kw2, kb2 = jax.random.split(key, 5)
    N, H, W = 2, 16, 16
    x = jax.random.normal(kx, (N, C_IN, H, W), dtype=jnp.float32)

    # Case 1: module init, matching create_conv(1, 2, 2, -1, -2) for both convs:
    # weights filled with -1, biases filled with -2.
    w1 = jnp.full((C_OUT, C_IN, KH, KW), -1.0, dtype=jnp.float32)
    b1 = jnp.full((C_OUT,), -2.0, dtype=jnp.float32)
    w2 = jnp.full((C_OUT, C_IN, KH, KW), -1.0, dtype=jnp.float32)
    b2 = jnp.full((C_OUT,), -2.0, dtype=jnp.float32)

    out1, out2 = double_weights_per_activation(x, w1, b1, w2, b2)
    jax.block_until_ready((out1, out2))
    np.testing.assert_allclose(np.asarray(out1), _reference(x, w1, b1), rtol=1e-5, atol=1e-5)
    np.testing.assert_allclose(np.asarray(out2), _reference(x, w2, b2), rtol=1e-5, atol=1e-5)

    # Case 2: distinct random params so a conv1/conv2 (or weight/bias) routing
    # mistake would be caught (the default init makes out1 == out2).
    w1r = jax.random.normal(kw1, (C_OUT, C_IN, KH, KW), jnp.float32)
    b1r = jax.random.normal(kb1, (C_OUT,), jnp.float32)
    w2r = jax.random.normal(kw2, (C_OUT, C_IN, KH, KW), jnp.float32)
    b2r = jax.random.normal(kb2, (C_OUT,), jnp.float32)
    o1r, o2r = double_weights_per_activation(x, w1r, b1r, w2r, b2r)
    jax.block_until_ready((o1r, o2r))
    np.testing.assert_allclose(np.asarray(o1r), _reference(x, w1r, b1r), rtol=1e-5, atol=1e-5)
    np.testing.assert_allclose(np.asarray(o2r), _reference(x, w2r, b2r), rtol=1e-5, atol=1e-5)

    print("KERNEL_OK")
</pallas_src>

<mosaic_0001>
module attributes {stable_mosaic.version = 11 : i64} {
  func.func @_double_conv_kernel(%arg0: i32, %arg1: memref<16xf32, #tpu.memory_space<smem>>, %arg2: memref<4xf32, #tpu.memory_space<smem>>, %arg3: memref<16x128xf32, #tpu.memory_space<vmem>>, %arg4: memref<4x16x128xf32, #tpu.memory_space<vmem>>) attributes {dimension_semantics = [#tpu.dimension_semantics<parallel>], iteration_bounds = array<i64: 1>, scalar_prefetch = 0 : i64, scratch_operands = 0 : i64, tpu.core_type = #tpu.core_type<tc>, window_params = [{transform_indices = @transform_0, window_bounds = array<i64: 16>}, {transform_indices = @transform_1, window_bounds = array<i64: 4>}, {transform_indices = @transform_2, window_bounds = array<i64: 16, 128>}, {transform_indices = @transform_3, window_bounds = array<i64: 4, 16, 128>}]} {
    %c0 = arith.constant 0 : index
    %c0_0 = arith.constant 0 : index
    %0 = vector.load %arg3[%c0, %c0_0] : memref<16x128xf32, #tpu.memory_space<vmem>>, vector<16x128xf32>
    %cst = arith.constant 0.000000e+00 : f32
    %1 = vector.broadcast %cst : f32 to vector<16x128xf32>
    %2 = arith.maximumf %0, %1 : vector<16x128xf32>
    %cst_1 = arith.constant 0.000000e+00 : f32
    %3 = vector.broadcast %cst_1 : f32 to vector<16x1xf32>
    %4 = vector.extract_strided_slice %2 {offsets = [0, 1], sizes = [16, 127], strides = [1, 1]} : vector<16x128xf32> to vector<16x127xf32>
    %5 = tpu.concatenate %4, %3 in 1 : vector<16x127xf32>, vector<16x1xf32> -> vector<16x128xf32>
    %cst_2 = arith.constant 0.000000e+00 : f32
    %6 = vector.broadcast %cst_2 : f32 to vector<1x128xf32>
    %7 = vector.extract_strided_slice %2 {offsets = [1, 0], sizes = [15, 128], strides = [1, 1]} : vector<16x128xf32> to vector<15x128xf32>
    %8 = tpu.concatenate %7, %6 in 0 : vector<15x128xf32>, vector<1x128xf32> -> vector<16x128xf32>
    %cst_3 = arith.constant 0.000000e+00 : f32
    %9 = vector.broadcast %cst_3 : f32 to vector<1x128xf32>
    %10 = vector.extract_strided_slice %5 {offsets = [1, 0], sizes = [15, 128], strides = [1, 1]} : vector<16x128xf32> to vector<15x128xf32>
    %11 = tpu.concatenate %10, %9 in 0 : vector<15x128xf32>, vector<1x128xf32> -> vector<16x128xf32>
    %c0_4 = arith.constant 0 : index
    %12 = memref.load %arg1[%c0_4] : memref<16xf32, #tpu.memory_space<smem>>
    %c1 = arith.constant 1 : index
    %13 = memref.load %arg1[%c1] : memref<16xf32, #tpu.memory_space<smem>>
    %c2 = arith.constant 2 : index
    %14 = memref.load %arg1[%c2] : memref<16xf32, #tpu.memory_space<smem>>
    %c3 = arith.constant 3 : index
    %15 = memref.load %arg1[%c3] : memref<16xf32, #tpu.memory_space<smem>>
    %c4 = arith.constant 4 : index
    %16 = memref.load %arg1[%c4] : memref<16xf32, #tpu.memory_space<smem>>
    %c5 = arith.constant 5 : index
    %17 = memref.load %arg1[%c5] : memref<16xf32, #tpu.memory_space<smem>>
    %c6 = arith.constant 6 : index
    %18 = memref.load %arg1[%c6] : memref<16xf32, #tpu.memory_space<smem>>
    %c7 = arith.constant 7 : index
    %19 = memref.load %arg1[%c7] : memref<16xf32, #tpu.memory_space<smem>>
    %c8 = arith.constant 8 : index
    %20 = memref.load %arg1[%c8] : memref<16xf32, #tpu.memory_space<smem>>
    %c9 = arith.constant 9 : index
    %21 = memref.load %arg1[%c9] : memref<16xf32, #tpu.memory_space<smem>>
    %c10 = arith.constant 10 : index
    %22 = memref.load %arg1[%c10] : memref<16xf32, #tpu.memory_space<smem>>
    %c11 = arith.constant 11 : index
    %23 = memref.load %arg1[%c11] : memref<16xf32, #tpu.memory_space<smem>>
    %c12 = arith.constant 12 : index
    %24 = memref.load %arg1[%c12] : memref<16xf32, #tpu.memory_space<smem>>
    %c13 = arith.constant 13 : index
    %25 = memref.load %arg1[%c13] : memref<16xf32, #tpu.memory_space<smem>>
    %c14 = arith.constant 14 : index
    %26 = memref.load %arg1[%c14] : memref<16xf32, #tpu.memory_space<smem>>
    %c15 = arith.constant 15 : index
    %27 = memref.load %arg1[%c15] : memref<16xf32, #tpu.memory_space<smem>>
    %c0_5 = arith.constant 0 : index
    %28 = memref.load %arg2[%c0_5] : memref<4xf32, #tpu.memory_space<smem>>
    %c1_6 = arith.constant 1 : index
    %29 = memref.load %arg2[%c1_6] : memref<4xf32, #tpu.memory_space<smem>>
    %c2_7 = arith.constant 2 : index
    %30 = memref.load %arg2[%c2_7] : memref<4xf32, #tpu.memory_space<smem>>
    %c3_8 = arith.constant 3 : index
    %31 = memref.load %arg2[%c3_8] : memref<4xf32, #tpu.memory_space<smem>>
    %32 = vector.broadcast %12 : f32 to vector<16x128xf32>
    %33 = arith.mulf %2, %32 : vector<16x128xf32>
    %34 = vector.broadcast %28 : f32 to vector<16x128xf32>
    %35 = arith.addf %33, %34 : vector<16x128xf32>
    %36 = vector.broadcast %13 : f32 to vector<16x128xf32>
    %37 = arith.mulf %5, %36 : vector<16x128xf32>
    %38 = arith.addf %35, %37 : vector<16x128xf32>
    %39 = vector.broadcast %14 : f32 to vector<16x128xf32>
    %40 = arith.mulf %8, %39 : vector<16x128xf32>
    %41 = arith.addf %38, %40 : vector<16x128xf32>
    %42 = vector.broadcast %15 : f32 to vector<16x128xf32>
    %43 = arith.mulf %11, %42 : vector<16x128xf32>
    %44 = arith.addf %41, %43 : vector<16x128xf32>
    %c0_9 = arith.constant 0 : index
    %c0_10 = arith.constant 0 : index
    %c0_11 = arith.constant 0 : index
    %45 = vector.load %arg4[%c0_9, %c0_10, %c0_11] : memref<4x16x128xf32, #tpu.memory_space<vmem>>, vector<1x16x128xf32>
    %46 = vector.shape_cast %45 : vector<1x16x128xf32> to vector<16x128xf32>
    %47 = vector.shape_cast %44 : vector<16x128xf32> to vector<1x16x128xf32>
    tpu.vector_store %arg4[%c0_9, %c0_10, %c0_11], %47 {strides = array<i32>} : memref<4x16x128xf32, #tpu.memory_space<vmem>>, vector<1x16x128xf32>,
    %48 = vector.broadcast %16 : f32 to vector<16x128xf32>
    %49 = arith.mulf %2, %48 : vector<16x128xf32>
    %50 = vector.broadcast %29 : f32 to vector<16x128xf32>
    %51 = arith.addf %49, %50 : vector<16x128xf32>
    %52 = vector.broadcast %17 : f32 to vector<16x128xf32>
    %53 = arith.mulf %5, %52 : vector<16x128xf32>
    %54 = arith.addf %51, %53 : vector<16x128xf32>
    %55 = vector.broadcast %18 : f32 to vector<16x128xf32>
    %56 = arith.mulf %8, %55 : vector<16x128xf32>
    %57 = arith.addf %54, %56 : vector<16x128xf32>
    %58 = vector.broadcast %19 : f32 to vector<16x128xf32>
    %59 = arith.mulf %11, %58 : vector<16x128xf32>
    %60 = arith.addf %57, %59 : vector<16x128xf32>
    %c1_12 = arith.constant 1 : index
    %c0_13 = arith.constant 0 : index
    %c0_14 = arith.constant 0 : index
    %61 = vector.load %arg4[%c1_12, %c0_13, %c0_14] : memref<4x16x128xf32, #tpu.memory_space<vmem>>, vector<1x16x128xf32>
    %62 = vector.shape_cast %61 : vector<1x16x128xf32> to vector<16x128xf32>
    %63 = vector.shape_cast %60 : vector<16x128xf32> to vector<1x16x128xf32>
    tpu.vector_store %arg4[%c1_12, %c0_13, %c0_14], %63 {strides = array<i32>} : memref<4x16x128xf32, #tpu.memory_space<vmem>>, vector<1x16x128xf32>,
    %64 = vector.broadcast %20 : f32 to vector<16x128xf32>
    %65 = arith.mulf %2, %64 : vector<16x128xf32>
    %66 = vector.broadcast %30 : f32 to vector<16x128xf32>
    %67 = arith.addf %65, %66 : vector<16x128xf32>
    %68 = vector.broadcast %21 : f32 to vector<16x128xf32>
    %69 = arith.mulf %5, %68 : vector<16x128xf32>
    %70 = arith.addf %67, %69 : vector<16x128xf32>
    %71 = vector.broadcast %22 : f32 to vector<16x128xf32>
    %72 = arith.mulf %8, %71 : vector<16x128xf32>
    %73 = arith.addf %70, %72 : vector<16x128xf32>
    %74 = vector.broadcast %23 : f32 to vector<16x128xf32>
    %75 = arith.mulf %11, %74 : vector<16x128xf32>
    %76 = arith.addf %73, %75 : vector<16x128xf32>
    %c2_15 = arith.constant 2 : index
    %c0_16 = arith.constant 0 : index
    %c0_17 = arith.constant 0 : index
    %77 = vector.load %arg4[%c2_15, %c0_16, %c0_17] : memref<4x16x128xf32, #tpu.memory_space<vmem>>, vector<1x16x128xf32>
    %78 = vector.shape_cast %77 : vector<1x16x128xf32> to vector<16x128xf32>
    %79 = vector.shape_cast %76 : vector<16x128xf32> to vector<1x16x128xf32>
    tpu.vector_store %arg4[%c2_15, %c0_16, %c0_17], %79 {strides = array<i32>} : memref<4x16x128xf32, #tpu.memory_space<vmem>>, vector<1x16x128xf32>,
    %80 = vector.broadcast %24 : f32 to vector<16x128xf32>
    %81 = arith.mulf %2, %80 : vector<16x128xf32>
    %82 = vector.broadcast %31 : f32 to vector<16x128xf32>
    %83 = arith.addf %81, %82 : vector<16x128xf32>
    %84 = vector.broadcast %25 : f32 to vector<16x128xf32>
    %85 = arith.mulf %5, %84 : vector<16x128xf32>
    %86 = arith.addf %83, %85 : vector<16x128xf32>
    %87 = vector.broadcast %26 : f32 to vector<16x128xf32>
    %88 = arith.mulf %8, %87 : vector<16x128xf32>
    %89 = arith.addf %86, %88 : vector<16x128xf32>
    %90 = vector.broadcast %27 : f32 to vector<16x128xf32>
    %91 = arith.mulf %11, %90 : vector<16x128xf32>
    %92 = arith.addf %89, %91 : vector<16x128xf32>
    %c3_18 = arith.constant 3 : index
    %c0_19 = arith.constant 0 : index
    %c0_20 = arith.constant 0 : index
    %93 = vector.load %arg4[%c3_18, %c0_19, %c0_20] : memref<4x16x128xf32, #tpu.memory_space<vmem>>, vector<1x16x128xf32>
    %94 = vector.shape_cast %93 : vector<1x16x128xf32> to vector<16x128xf32>
    %95 = vector.shape_cast %92 : vector<16x128xf32> to vector<1x16x128xf32>
    tpu.vector_store %arg4[%c3_18, %c0_19, %c0_20], %95 {strides = array<i32>} : memref<4x16x128xf32, #tpu.memory_space<vmem>>, vector<1x16x128xf32>,
    return
  }
  func.func @transform_0(%arg0: i32) -> i32 {
    %c0_i32 = arith.constant 0 : i32
    %c0_i32_0 = arith.constant 0 : i32
    return %c0_i32 : i32
  }
  func.func @transform_1(%arg0: i32) -> i32 {
    %c0_i32 = arith.constant 0 : i32
    %c0_i32_0 = arith.constant 0 : i32
    return %c0_i32 : i32
  }
  func.func @transform_2(%arg0: i32) -> (i32, i32) {
    %c0_i32 = arith.constant 0 : i32
    %c0_i32_0 = arith.constant 0 : i32
    return %c0_i32, %arg0 : i32, i32
  }
  func.func @transform_3(%arg0: i32) -> (i32, i32, i32) {
    %c0_i32 = arith.constant 0 : i32
    %c0_i32_0 = arith.constant 0 : i32
    %c0_i32_1 = arith.constant 0 : i32
    return %c0_i32, %c0_i32_0, %arg0 : i32, i32, i32
  }
}

</mosaic_0001>

<llo_original>
// kernel: tpu_custom_call.1
$region0: #{tpu_custom_call.1}
  #allocation0 [shape = 'u32[]', space=smem, size = 0x4, offset = 0x4, fixed_abs, tag = 'smem constant byte address 0x4 - core index']
  #allocation1 [shape = 'u32[144,128]{1,0:T(1,128)}', space=vmem, size = 0x12000, scoped, tag = 'internal scratch']
  %s0 = inlined_call_operand.hbm [shape: f32[16], index: 0, kind: input, shape index: {}]
  %s1 = inlined_call_operand.vmem [shape: f32[4], index: 1, kind: input, shape index: {}]
  %s2 = inlined_call_operand.hbm [shape: f32[16,128], index: 2, kind: input, shape index: {}]
  %s3 = inlined_call_operand.hbm [shape: f32[4,16,128], index: 3, kind: output, shape index: {}]
  %s4 = sld [smem:[#allocation0]]
  $region34: #{tpu_custom_call.1} parent=0
    _
  %s6 = ssub.s32 1, %s4
  %s7 = scalar_select 0, %s6, %s4
  $region1: #{tpu_custom_call.1} parent=0
    #allocation2 [shape = 'u8[512]{0}', space=smem, size = 0x200, scoped, tag = 'input window, operand 0, single buffered']
    #allocation3 [shape = 's32[1]{0}', space=sflag, size = 0x4, scoped, tag = 'scoped memory for tpu_custom_call.1']
    #allocation4 [shape = 's32[1]{0}', space=sflag, size = 0x4, scoped, tag = 'scoped memory for tpu_custom_call.1']
    #allocation5 [shape = 's32[1]{0}', space=sflag, size = 0x4, scoped, tag = 'scoped memory for tpu_custom_call.1']
    #allocation6 [shape = 's32[1]{0}', space=sflag, size = 0x4, scoped, tag = 'scoped memory for tpu_custom_call.1']
    #allocation7 [shape = 'u8[512]{0}', space=smem, size = 0x200, scoped, tag = 'input window, operand 1, single buffered']
    #allocation8 [shape = 'u8[8192]{0}', space=vmem, size = 0x2000, scoped, tag = 'input window, operand 2, single buffered']
    #allocation9 [shape = 'u8[32768]{0}', space=vmem, size = 0x8000, scoped, tag = 'output window, operand 0, single buffered']
    %8 = vsyncpa [#allocation5], 0
    %9 = vsyncpa [#allocation6], 0
    %10 = vsyncpa [#allocation3], 0
    %11 = vsyncpa [#allocation4], 0
    // Predicated region
    $region2: #{tpu_custom_call.1} parent=1 // pred_check
      _
    $region3: #{tpu_custom_call.1} parent=1 // pred_check_branch
      %13 = sbr.rel (0) target = $region5
    $region4: #{tpu_custom_call.1} parent=1 // pred_region
      %s15 = ssub.s32 16, 16
      %16 = vsyncadd [#allocation5], %s15
      %19 = dma.hbm_to_smem %s0, 16, [#allocation2], [#allocation5]
    $region5: #{tpu_custom_call.1} parent=1 // pred_fallthru
      _
    // Predicated region
    $region6: #{tpu_custom_call.1} parent=1 // pred_check
      _
    $region7: #{tpu_custom_call.1} parent=1 // pred_check_branch
      %21 = sbr.rel (0) target = $region9
    $region8: #{tpu_custom_call.1} parent=1 // pred_region
      %s23 = ssub.s32 16, 16
      %24 = vsyncadd [#allocation6], %s23
      %s26 = sshll.u32 %s1, 4
      %s27 = int_to_ptr.vmem [resolvable:$true] %s26
      %29 = dma.vmem_to_smem %s27, 16, [#allocation7], [#allocation6]
    $region9: #{tpu_custom_call.1} parent=1 // pred_fallthru
      _
    // Predicated region
    $region10: #{tpu_custom_call.1} parent=1 // pred_check
      _
    $region11: #{tpu_custom_call.1} parent=1 // pred_check_branch
      %31 = sbr.rel (0) target = $region13
    $region12: #{tpu_custom_call.1} parent=1 // pred_region
      %s33 = ssub.s32 256, 256
      %34 = vsyncadd [#allocation3], %s33
      %s35 = sshll.u32 [#allocation8], 4
      %s36 = int_to_ptr.vmem [resolvable:$true] %s35
      %41 = dma.hbm_to_vmem [thread:$0]  %s2, 256, %s36, [#allocation3], 128, 128, 8
    $region13: #{tpu_custom_call.1} parent=1 // pred_fallthru
      _
    // Predicated region
    $region14: #{tpu_custom_call.1} parent=1 // pred_check
      _
    $region15: #{tpu_custom_call.1} parent=1 // pred_check_branch
      %43 = sbr.rel (0) target = $region17
    $region16: #{tpu_custom_call.1} parent=1 // pred_region
      %44 = dma.done [#allocation5], 16
    $region17: #{tpu_custom_call.1} parent=1 // pred_fallthru
      _
    // Predicated region
    $region18: #{tpu_custom_call.1} parent=1 // pred_check
      _
    $region19: #{tpu_custom_call.1} parent=1 // pred_check_branch
      %46 = sbr.rel (0) target = $region21
    $region20: #{tpu_custom_call.1} parent=1 // pred_region
      %47 = dma.done [#allocation6], 16
    $region21: #{tpu_custom_call.1} parent=1 // pred_fallthru
      _
    // Predicated region
    $region22: #{tpu_custom_call.1} parent=1 // pred_check
      _
    $region23: #{tpu_custom_call.1} parent=1 // pred_check_branch
      %49 = sbr.rel (0) target = $region25
    $region24: #{tpu_custom_call.1} parent=1 // pred_region
      %50 = dma.done [#allocation3], 256
    $region25: #{tpu_custom_call.1} parent=1 // pred_fallthru
      _
    %51 = sfence
    %v52 = vld [vmem:[#allocation8] sm:$0xff]
    %v53 = vld [vmem:[#allocation8 + $0x8] sm:$0xff]
    %v54 = vmax.f32 %v52, 0.0
    %v55 = vmax.f32 %v53, 0.0
    %58 = vrot.lane.b32.xlu0 %v54, 127
    %v59 = vpop.permute.xlu0 %58
    %60 = vrot.lane.b32.xlu0 %v55, 127
    %v61 = vpop.permute.xlu0 %60
    %vm64 = vcmask 1039360
    %v65 = vsel %vm64, %v59, 0.0
    %v66 = vsel %vm64, %v61, 0.0
    %vm67 = vcmask 1046528
    %v68 = vrot.slane %v54, 1
    %v69 = vrot.slane %v55, 1
    %v70 = vsel %vm67, %v68, %v69
    %v73 = vsel %vm67, %v69, 0.0
    %v76 = vrot.slane %v65, 1
    %v77 = vrot.slane %v66, 1
    %v78 = vsel %vm67, %v76, %v77
    %v81 = vsel %vm67, %v77, 0.0
    %s82 = sld [smem:[#allocation2]]
    %s83 = sld [smem:[#allocation2 + $0x1]]
    %s84 = sld [smem:[#allocation2 + $0x2]]
    %s85 = sld [smem:[#allocation2 + $0x3]]
    %s86 = sld [smem:[#allocation2 + $0x4]]
    %s87 = sld [smem:[#allocation2 + $0x5]]
    %s88 = sld [smem:[#allocation2 + $0x6]]
    %s89 = sld [smem:[#allocation2 + $0x7]]
    %s90 = sld [smem:[#allocation2 + $0x8]]
    %s91 = sld [smem:[#allocation2 + $0x9]]
    %s92 = sld [smem:[#allocation2 + $0xa]]
    %s93 = sld [smem:[#allocation2 + $0xb]]
    %s94 = sld [smem:[#allocation2 + $0xc]]
    %s95 = sld [smem:[#allocation2 + $0xd]]
    %s96 = sld [smem:[#allocation2 + $0xe]]
    %s97 = sld [smem:[#allocation2 + $0xf]]
    %s98 = sld [smem:[#allocation7]]
    %s99 = sld [smem:[#allocation7 + $0x1]]
    %s100 = sld [smem:[#allocation7 + $0x2]]
    %s101 = sld [smem:[#allocation7 + $0x3]]
    %v102 = vstv %s82
    %v103 = vmul.f32 %v54, %v102
    %v104 = vmul.f32 %v55, %v102
    %v105 = vstv %s98
    %v106 = vadd.f32 %v103, %v105
    %v107 = vadd.f32 %v104, %v105
    %v108 = vstv %s83
    %v109 = vmul.f32 %v65, %v108
    %v110 = vmul.f32 %v66, %v108
    %v111 = vadd.f32 %v106, %v109
    %v112 = vadd.f32 %v107, %v110
    %v113 = vstv %s84
    %v114 = vmul.f32 %v70, %v113
    %v115 = vmul.f32 %v73, %v113
    %v116 = vadd.f32 %v111, %v114
    %v117 = vadd.f32 %v112, %v115
    %v118 = vstv %s85
    %v119 = vmul.f32 %v78, %v118
    %v120 = vmul.f32 %v81, %v118
    %v121 = vadd.f32 %v116, %v119
    %v122 = vadd.f32 %v117, %v120
    %123 = vst [vmem:[#allocation9] sm:$0xff] %v121
    %124 = vst [vmem:[#allocation9 + $0x8] sm:$0xff] %v122
    %v125 = vstv %s86
    %v126 = vmul.f32 %v54, %v125
    %v127 = vmul.f32 %v55, %v125
    %v128 = vstv %s99
    %v129 = vadd.f32 %v126, %v128
    %v130 = vadd.f32 %v127, %v128
    %v131 = vstv %s87
    %v132 = vmul.f32 %v65, %v131
    %v133 = vmul.f32 %v66, %v131
    %v134 = vadd.f32 %v129, %v132
    %v135 = vadd.f32 %v130, %v133
    %v136 = vstv %s88
    %v137 = vmul.f32 %v70, %v136
    %v138 = vmul.f32 %v73, %v136
    %v139 = vadd.f32 %v134, %v137
    %v140 = vadd.f32 %v135, %v138
    %v141 = vstv %s89
    %v142 = vmul.f32 %v78, %v141
    %v143 = vmul.f32 %v81, %v141
    %v144 = vadd.f32 %v139, %v142
    %v145 = vadd.f32 %v140, %v143
    %s146 = scalar_lea.vmem [#allocation9], 16
    %147 = vst [vmem:[%s146] sm:$0xff] %v144
    %148 = vst [vmem:[%s146 + $0x8] sm:$0xff] %v145
    %v149 = vstv %s90
    %v150 = vmul.f32 %v54, %v149
    %v151 = vmul.f32 %v55, %v149
    %v152 = vstv %s100
    %v153 = vadd.f32 %v150, %v152
    %v154 = vadd.f32 %v151, %v152
    %v155 = vstv %s91
    %v156 = vmul.f32 %v65, %v155
    %v157 = vmul.f32 %v66, %v155
    %v158 = vadd.f32 %v153, %v156
    %v159 = vadd.f32 %v154, %v157
    %v160 = vstv %s92
    %v161 = vmul.f32 %v70, %v160
    %v162 = vmul.f32 %v73, %v160
    %v163 = vadd.f32 %v158, %v161
    %v164 = vadd.f32 %v159, %v162
    %v165 = vstv %s93
    %v166 = vmul.f32 %v78, %v165
    %v167 = vmul.f32 %v81, %v165
    %v168 = vadd.f32 %v163, %v166
    %v169 = vadd.f32 %v164, %v167
    %s170 = scalar_lea.vmem [#allocation9], 32
    %171 = vst [vmem:[%s170] sm:$0xff] %v168
    %172 = vst [vmem:[%s170 + $0x8] sm:$0xff] %v169
    %v173 = vstv %s94
    %v174 = vmul.f32 %v54, %v173
    %v175 = vmul.f32 %v55, %v173
    %v176 = vstv %s101
    %v177 = vadd.f32 %v174, %v176
    %v178 = vadd.f32 %v175, %v176
    %v179 = vstv %s95
    %v180 = vmul.f32 %v65, %v179
    %v181 = vmul.f32 %v66, %v179
    %v182 = vadd.f32 %v177, %v180
    %v183 = vadd.f32 %v178, %v181
    %v184 = vstv %s96
    %v185 = vmul.f32 %v70, %v184
    %v186 = vmul.f32 %v73, %v184
    %v187 = vadd.f32 %v182, %v185
    %v188 = vadd.f32 %v183, %v186
    %v189 = vstv %s97
    %v190 = vmul.f32 %v78, %v189
    %v191 = vmul.f32 %v81, %v189
    %v192 = vadd.f32 %v187, %v190
    %v193 = vadd.f32 %v188, %v191
    %s194 = scalar_lea.vmem [#allocation9], 48
    %195 = vst [vmem:[%s194] sm:$0xff] %v192
    %196 = vst [vmem:[%s194 + $0x8] sm:$0xff] %v193
    // Predicated region
    $region26: #{tpu_custom_call.1} parent=1 // pred_check
      _
    $region27: #{tpu_custom_call.1} parent=1 // pred_check_branch
      %198 = sbr.rel (0) target = $region29
    $region28: #{tpu_custom_call.1} parent=1 // pred_region
      %s200 = ssub.s32 1024, 1024
      %201 = vsyncadd [#allocation4], %s200
      %s202 = sshll.u32 [#allocation9], 4
      %s203 = int_to_ptr.vmem [resolvable:$true] %s202
      %208 = dma.vmem_to_hbm [thread:$0]  %s203, 1024, %s3, [#allocation4], 128, 128, 8
    $region29: #{tpu_custom_call.1} parent=1 // pred_fallthru
      _
    // Predicated region
    $region30: #{tpu_custom_call.1} parent=1 // pred_check
      _
    $region31: #{tpu_custom_call.1} parent=1 // pred_check_branch
      %210 = sbr.rel (0) target = $region33
    $region32: #{tpu_custom_call.1} parent=1 // pred_region
      %211 = dma.done [#allocation4], 1024
    $region33: #{tpu_custom_call.1} parent=1 // pred_fallthru
      _
    %212 = vsyncpa [#allocation3], 1
    %213 = vsyncpa [#allocation4], 1
    %214 = vsyncpa [#allocation5], 1
    %215 = vsyncpa [#allocation6], 1

</llo_original>
